<compile_context>
chip_gen: v5e
topology: v5e:2x2
jax: 0.10.0
libtpu: 0.0.40
codegen_flags: <defaults>
</compile_context>

<pallas_src>
import jax
import jax.numpy as jnp
from jax.experimental import pallas as pl
from jax.experimental.pallas import tpu as pltpu


def _round_up(x, m):
    return (x + m - 1) // m * m


def cai_main_kernel(x_ref, s_ref, wx_ref, ws_ref, be_ref, wh_ref, bh_ref,
                    out_ref, h_acc):
    """One (batch-tile, K-tile) grid step of the CAI phase='main' forward.

    x_ref  : (TB, tk)       bf16 tile of flattened image
    s_ref  : (TB, s_dim)    bf16 conditioning vector
    wx_ref : (tk, h_dim)    bf16 K-tile of the encoder weight for x
    ws_ref : (s_dim, h_dim) bf16 encoder weight for s
    be_ref : (1, h_dim)     f32 encoder bias
    wh_ref : (h_dim, n_out) bf16 fused [predictor | reconstructor] weight
    bh_ref : (1, n_out)     f32 fused head bias
    out_ref: (TB, n_out)    f32 fused head output (resident across K axis)
    h_acc  : (TB, h_dim)    f32 VMEM accumulator for the encoder pre-activation
    """
    k = pl.program_id(1)

    @pl.when(k == 0)
    def _init():
        # Initialize with the (tiny) s-contribution plus bias.
        h_acc[...] = (jnp.dot(s_ref[...], ws_ref[...],
                              preferred_element_type=jnp.float32)
                      + be_ref[...])

    # Stream the dominant encoder matmul over K tiles, f32 accumulate in scratch.
    h_acc[...] += jnp.dot(x_ref[...], wx_ref[...],
                          preferred_element_type=jnp.float32)

    @pl.when(k == pl.num_programs(1) - 1)
    def _finalize():
        h = jnp.maximum(h_acc[...], 0.0).astype(wh_ref.dtype)
        out_ref[...] = (jnp.dot(h, wh_ref[...],
                                preferred_element_type=jnp.float32)
                        + bh_ref[...]).astype(out_ref.dtype)


def cai_forward_main(x, s, params, *, batch_tile=128, k_tile=2048):
    """phase='main' forward: returns [x_pred, s_reconst]."""
    B = x.shape[0]
    x_flat = x.reshape(B, -1)                      # NCHW flatten, same order as x.view(bs,-1)
    d_x = x_flat.shape[1]
    s_dim = s.shape[1]
    h_dim = params["w_enc_x"].shape[1]
    n_cls = params["w_pred"].shape[1]
    n_out = n_cls + s_dim

    # Fused head weights: [predictor | reconstructor].
    w_head = jnp.concatenate([params["w_pred"], params["w_rec"]], axis=1)
    b_head = jnp.concatenate([params["b_pred"], params["b_rec"]], axis=1)

    cdt = jnp.bfloat16
    x_flat = x_flat.astype(cdt)
    s_in = s.astype(cdt)
    wx = params["w_enc_x"].astype(cdt)
    ws = params["w_enc_s"].astype(cdt)
    wh = w_head.astype(cdt)
    be = params["b_enc"].astype(jnp.float32)
    bh = b_head.astype(jnp.float32)

    # Pad batch to a multiple of the batch tile.
    tb = batch_tile
    b_pad = _round_up(B, tb)
    if b_pad != B:
        x_flat = jnp.pad(x_flat, ((0, b_pad - B), (0, 0)))
        s_in = jnp.pad(s_in, ((0, b_pad - B), (0, 0)))

    # Pad the K (d_x) dim to a multiple of the K tile (zero pad is matmul-neutral).
    tk = min(k_tile, _round_up(d_x, 128))
    d_x_pad = _round_up(d_x, tk)
    if d_x_pad != d_x:
        x_flat = jnp.pad(x_flat, ((0, 0), (0, d_x_pad - d_x)))
        wx = jnp.pad(wx, ((0, d_x_pad - d_x), (0, 0)))

    grid = (b_pad // tb, d_x_pad // tk)

    def full(r, c):
        return pl.BlockSpec((r, c), lambda i, k: (0, 0))

    out = pl.pallas_call(
        cai_main_kernel,
        out_shape=jax.ShapeDtypeStruct((b_pad, n_out), jnp.float32),
        grid_spec=pltpu.PrefetchScalarGridSpec(
            num_scalar_prefetch=0,
            grid=grid,
            in_specs=[
                pl.BlockSpec((tb, tk), lambda i, k: (i, k)),      # x   (batch, K tiled)
                pl.BlockSpec((tb, s_dim), lambda i, k: (i, 0)),   # s   (batch tiled)
                pl.BlockSpec((tk, h_dim), lambda i, k: (k, 0)),   # W_enc_x (K tiled)
                full(s_dim, h_dim),                               # W_enc_s
                full(1, h_dim),                                   # b_enc
                full(h_dim, n_out),                               # fused head weight
                full(1, n_out),                                   # fused head bias
            ],
            out_specs=pl.BlockSpec((tb, n_out), lambda i, k: (i, 0)),
            scratch_shapes=[pltpu.VMEM((tb, h_dim), jnp.float32)],
        ),
        compiler_params=pltpu.CompilerParams(
            dimension_semantics=("parallel", "arbitrary"),
            vmem_limit_bytes=32 * 1024 * 1024,
        ),
    )(x_flat, s_in, wx, ws, be, wh, bh)

    out = out[:B]
    return [out[:, :n_cls], out[:, n_cls:]]


def init_params(key, d_x, s_dim, h_dim, n_cls):
    """Deterministic synthetic parameter init (PyTorch-Linear-like uniform scale)."""
    ks = jax.random.split(key, 8)

    def lin(kw, kb, fan_in, fan_out, bound):
        w = jax.random.uniform(kw, (fan_in, fan_out), jnp.float32, -bound, bound)
        b = jax.random.uniform(kb, (1, fan_out), jnp.float32, -bound, bound)
        return w, b

    enc_bound = 1.0 / jnp.sqrt(d_x + s_dim)
    w_enc_x, b_enc = lin(ks[0], ks[1], d_x, h_dim, enc_bound)
    w_enc_s, _ = lin(ks[2], ks[3], s_dim, h_dim, enc_bound)
    head_bound = 1.0 / jnp.sqrt(h_dim)
    w_pred, b_pred = lin(ks[4], ks[5], h_dim, n_cls, head_bound)
    w_rec, b_rec = lin(ks[6], ks[7], h_dim, s_dim, head_bound)
    return dict(w_enc_x=w_enc_x, w_enc_s=w_enc_s, b_enc=b_enc,
                w_pred=w_pred, b_pred=b_pred, w_rec=w_rec, b_rec=b_rec)


def reference_forward(x, s, params):
    """Plain-JAX reference emulating the kernel's bf16 rounding, f32 accumulation."""
    B = x.shape[0]

    def bf(a):
        return a.astype(jnp.bfloat16).astype(jnp.float32)

    hp = jax.lax.Precision.HIGHEST
    xf, sf = bf(x.reshape(B, -1)), bf(s)
    h = (jnp.dot(xf, bf(params["w_enc_x"]), precision=hp)
         + jnp.dot(sf, bf(params["w_enc_s"]), precision=hp)
         + params["b_enc"])
    h = bf(jnp.maximum(h, 0.0))
    pred = jnp.dot(h, bf(params["w_pred"]), precision=hp) + params["b_pred"]
    rec = jnp.dot(h, bf(params["w_rec"]), precision=hp) + params["b_rec"]
    return [pred, rec]


if __name__ == "__main__":
    # Small demo shapes consistent with the module's forward:
    # x: NCHW image, s: (B, s_dim) conditioning vector.
    B, C, H, W = 8, 1, 16, 16
    s_dim, h_dim, num_classes = 5, 32, 10

    key = jax.random.PRNGKey(0)
    kx, ks_, kp = jax.random.split(key, 3)
    x = jax.random.normal(kx, (B, C, H, W), jnp.float32)
    s = jax.random.normal(ks_, (B, s_dim), jnp.float32)

    d_x = C * H * W
    params = init_params(kp, d_x, s_dim, h_dim, num_classes)

    x_pred, s_reconst = cai_forward_main(x, s, params, batch_tile=128, k_tile=2048)
    jax.block_until_ready(x_pred)
    jax.block_until_ready(s_reconst)

    # sanity check against a plain-JAX reference
    ref_pred, ref_rec = reference_forward(x, s, params)
    assert jnp.allclose(x_pred, ref_pred, atol=1e-2, rtol=1e-2)
    assert jnp.allclose(s_reconst, ref_rec, atol=1e-2, rtol=1e-2)

    print("KERNEL_OK")
</pallas_src>

<mosaic_0001>
module attributes {stable_mosaic.version = 11 : i64} {
  func.func @cai_main_kernel(%arg0: i32, %arg1: i32, %arg2: memref<128x256xbf16, #tpu.memory_space<vmem>>, %arg3: memref<128x5xbf16, #tpu.memory_space<vmem>>, %arg4: memref<256x32xbf16, #tpu.memory_space<vmem>>, %arg5: memref<5x32xbf16, #tpu.memory_space<vmem>>, %arg6: memref<1x32xf32, #tpu.memory_space<vmem>>, %arg7: memref<32x15xbf16, #tpu.memory_space<vmem>>, %arg8: memref<1x15xf32, #tpu.memory_space<vmem>>, %arg9: memref<128x15xf32, #tpu.memory_space<vmem>>, %arg10: memref<128x32xf32, #tpu.memory_space<vmem>>) attributes {dimension_semantics = [#tpu.dimension_semantics<parallel>, #tpu.dimension_semantics<arbitrary>], iteration_bounds = array<i64: 1, 1>, scalar_prefetch = 0 : i64, scratch_operands = 1 : i64, tpu.core_type = #tpu.core_type<tc>, window_params = [{transform_indices = @transform_0, window_bounds = array<i64: 128, 256>}, {transform_indices = @transform_1, window_bounds = array<i64: 128, 5>}, {transform_indices = @transform_2, window_bounds = array<i64: 256, 32>}, {pipeline_mode = #tpu.pipeline_mode<synchronous>, transform_indices = @transform_3, window_bounds = array<i64: 5, 32>}, {pipeline_mode = #tpu.pipeline_mode<synchronous>, transform_indices = @transform_4, window_bounds = array<i64: 1, 32>}, {pipeline_mode = #tpu.pipeline_mode<synchronous>, transform_indices = @transform_5, window_bounds = array<i64: 32, 15>}, {pipeline_mode = #tpu.pipeline_mode<synchronous>, transform_indices = @transform_6, window_bounds = array<i64: 1, 15>}, {transform_indices = @transform_7, window_bounds = array<i64: 128, 15>}]} {
    %c0_i32 = arith.constant 0 : i32
    %0 = arith.cmpi eq, %arg1, %c0_i32 : i32
    %1 = arith.extui %0 : i1 to i32
    %c0_i32_0 = arith.constant 0 : i32
    %2 = arith.cmpi ne, %1, %c0_i32_0 : i32
    scf.if %2 {
      %c0_10 = arith.constant 0 : index
      %c0_11 = arith.constant 0 : index
      %12 = vector.load %arg3[%c0_10, %c0_11] : memref<128x5xbf16, #tpu.memory_space<vmem>>, vector<128x5xbf16>
      %c0_12 = arith.constant 0 : index
      %c0_13 = arith.constant 0 : index
      %13 = vector.load %arg5[%c0_12, %c0_13] : memref<5x32xbf16, #tpu.memory_space<vmem>>, vector<5x32xbf16>
      %cst_14 = arith.constant dense<0.000000e+00> : vector<128x32xf32>
      %14 = tpu.matmul %12, %13, %cst_14 {dimension_numbers = #tpu.dot_dimension_numbers<[1], [0], [0], [1], [0, 0, 1, 1], [], []>} : vector<128x5xbf16>, vector<5x32xbf16>, vector<128x32xf32> -> vector<128x32xf32>
      %c0_15 = arith.constant 0 : index
      %c0_16 = arith.constant 0 : index
      %15 = vector.load %arg6[%c0_15, %c0_16] : memref<1x32xf32, #tpu.memory_space<vmem>>, vector<1x32xf32>
      %16 = vector.broadcast %15 : vector<1x32xf32> to vector<128x32xf32>
      %17 = arith.addf %14, %16 : vector<128x32xf32>
      %c0_17 = arith.constant 0 : index
      %c0_18 = arith.constant 0 : index
      %18 = vector.load %arg10[%c0_17, %c0_18] : memref<128x32xf32, #tpu.memory_space<vmem>>, vector<128x32xf32>
      tpu.vector_store %arg10[%c0_17, %c0_18], %17 {strides = array<i32>} : memref<128x32xf32, #tpu.memory_space<vmem>>, vector<128x32xf32>,
    } else {
    }
    %c0 = arith.constant 0 : index
    %c0_1 = arith.constant 0 : index
    %3 = vector.load %arg10[%c0, %c0_1] : memref<128x32xf32, #tpu.memory_space<vmem>>, vector<128x32xf32>
    %c0_2 = arith.constant 0 : index
    %c0_3 = arith.constant 0 : index
    %4 = vector.load %arg2[%c0_2, %c0_3] : memref<128x256xbf16, #tpu.memory_space<vmem>>, vector<128x256xbf16>
    %c0_4 = arith.constant 0 : index
    %c0_5 = arith.constant 0 : index
    %5 = vector.load %arg4[%c0_4, %c0_5] : memref<256x32xbf16, #tpu.memory_space<vmem>>, vector<256x32xbf16>
    %cst = arith.constant dense<0.000000e+00> : vector<128x32xf32>
    %6 = tpu.matmul %4, %5, %cst {dimension_numbers = #tpu.dot_dimension_numbers<[1], [0], [0], [1], [0, 0, 1, 1], [], []>} : vector<128x256xbf16>, vector<256x32xbf16>, vector<128x32xf32> -> vector<128x32xf32>
    %7 = arith.addf %3, %6 : vector<128x32xf32>
    %c0_6 = arith.constant 0 : index
    %c0_7 = arith.constant 0 : index
    %8 = vector.load %arg10[%c0_6, %c0_7] : memref<128x32xf32, #tpu.memory_space<vmem>>, vector<128x32xf32>
    tpu.vector_store %arg10[%c0_6, %c0_7], %7 {strides = array<i32>} : memref<128x32xf32, #tpu.memory_space<vmem>>, vector<128x32xf32>,
    %c0_i32_8 = arith.constant 0 : i32
    %9 = arith.cmpi eq, %arg1, %c0_i32_8 : i32
    %10 = arith.extui %9 : i1 to i32
    %c0_i32_9 = arith.constant 0 : i32
    %11 = arith.cmpi ne, %10, %c0_i32_9 : i32
    scf.if %11 {
      %c0_10 = arith.constant 0 : index
      %c0_11 = arith.constant 0 : index
      %12 = vector.load %arg10[%c0_10, %c0_11] : memref<128x32xf32, #tpu.memory_space<vmem>>, vector<128x32xf32>
      %cst_12 = arith.constant 0.000000e+00 : f32
      %13 = vector.broadcast %cst_12 : f32 to vector<128x32xf32>
      %14 = arith.maximumf %12, %13 : vector<128x32xf32>
      %15 = arith.truncf %14 : vector<128x32xf32> to vector<128x32xbf16>
      %c0_13 = arith.constant 0 : index
      %c0_14 = arith.constant 0 : index
      %16 = vector.load %arg7[%c0_13, %c0_14] : memref<32x15xbf16, #tpu.memory_space<vmem>>, vector<32x15xbf16>
      %cst_15 = arith.constant dense<0.000000e+00> : vector<128x15xf32>
      %17 = tpu.matmul %15, %16, %cst_15 {dimension_numbers = #tpu.dot_dimension_numbers<[1], [0], [0], [1], [0, 0, 1, 1], [], []>} : vector<128x32xbf16>, vector<32x15xbf16>, vector<128x15xf32> -> vector<128x15xf32>
      %c0_16 = arith.constant 0 : index
      %c0_17 = arith.constant 0 : index
      %18 = vector.load %arg8[%c0_16, %c0_17] : memref<1x15xf32, #tpu.memory_space<vmem>>, vector<1x15xf32>
      %19 = vector.broadcast %18 : vector<1x15xf32> to vector<128x15xf32>
      %20 = arith.addf %17, %19 : vector<128x15xf32>
      %c0_18 = arith.constant 0 : index
      %c0_19 = arith.constant 0 : index
      %21 = vector.load %arg9[%c0_18, %c0_19] : memref<128x15xf32, #tpu.memory_space<vmem>>, vector<128x15xf32>
      tpu.vector_store %arg9[%c0_18, %c0_19], %20 {strides = array<i32>} : memref<128x15xf32, #tpu.memory_space<vmem>>, vector<128x15xf32>,
    } else {
    }
    return
  }
  func.func @transform_0(%arg0: i32, %arg1: i32) -> (i32, i32) {
    %c0_i32 = arith.constant 0 : i32
    return %arg0, %arg1 : i32, i32
  }
  func.func @transform_1(%arg0: i32, %arg1: i32) -> (i32, i32) {
    %c0_i32 = arith.constant 0 : i32
    %c0_i32_0 = arith.constant 0 : i32
    return %arg0, %c0_i32 : i32, i32
  }
  func.func @transform_2(%arg0: i32, %arg1: i32) -> (i32, i32) {
    %c0_i32 = arith.constant 0 : i32
    %c0_i32_0 = arith.constant 0 : i32
    return %arg1, %c0_i32 : i32, i32
  }
  func.func @transform_3(%arg0: i32, %arg1: i32) -> (i32, i32) {
    %c0_i32 = arith.constant 0 : i32
    %c0_i32_0 = arith.constant 0 : i32
    %c0_i32_1 = arith.constant 0 : i32
    return %c0_i32, %c0_i32_0 : i32, i32
  }
  func.func @transform_4(%arg0: i32, %arg1: i32) -> (i32, i32) {
    %c0_i32 = arith.constant 0 : i32
    %c0_i32_0 = arith.constant 0 : i32
    %c0_i32_1 = arith.constant 0 : i32
    return %c0_i32, %c0_i32_0 : i32, i32
  }
  func.func @transform_5(%arg0: i32, %arg1: i32) -> (i32, i32) {
    %c0_i32 = arith.constant 0 : i32
    %c0_i32_0 = arith.constant 0 : i32
    %c0_i32_1 = arith.constant 0 : i32
    return %c0_i32, %c0_i32_0 : i32, i32
  }
  func.func @transform_6(%arg0: i32, %arg1: i32) -> (i32, i32) {
    %c0_i32 = arith.constant 0 : i32
    %c0_i32_0 = arith.constant 0 : i32
    %c0_i32_1 = arith.constant 0 : i32
    return %c0_i32, %c0_i32_0 : i32, i32
  }
  func.func @transform_7(%arg0: i32, %arg1: i32) -> (i32, i32) {
    %c0_i32 = arith.constant 0 : i32
    %c0_i32_0 = arith.constant 0 : i32
    return %arg0, %c0_i32 : i32, i32
  }
}

</mosaic_0001>

<llo_original>
// kernel: tpu_custom_call.1
$region0: #{tpu_custom_call.1}
  #allocation0 [shape = 'u32[]', space=smem, size = 0x4, offset = 0x4, fixed_abs, tag = 'smem constant byte address 0x4 - core index']
  #allocation1 [shape = 'u32[72,128]{1,0:T(1,128)}', space=vmem, size = 0x9000, scoped, tag = 'internal scratch']
  #allocation2 [shape = 'f32[128,32]{1,0:T(8,128)}', space=vmem, size = 0x10000, scoped, tag = 'scratch operand']
  %s0 = inlined_call_operand.vmem [shape: bf16[128,256], index: 0, kind: input, shape index: {}]
  %s1 = inlined_call_operand.vmem [shape: bf16[128,5], index: 1, kind: input, shape index: {}]
  %s2 = inlined_call_operand.vmem [shape: bf16[256,32], index: 2, kind: input, shape index: {}]
  %s3 = inlined_call_operand.vmem [shape: bf16[5,32], index: 3, kind: input, shape index: {}]
  %s4 = inlined_call_operand.vmem [shape: f32[1,32], index: 4, kind: input, shape index: {}]
  %s5 = inlined_call_operand.vmem [shape: bf16[32,15], index: 5, kind: input, shape index: {}]
  %s6 = inlined_call_operand.vmem [shape: f32[1,15], index: 6, kind: input, shape index: {}]
  %s7 = inlined_call_operand.vmem [shape: f32[128,15], index: 7, kind: output, shape index: {}]
  %s8 = sld [smem:[#allocation0]]
  $region46: #{tpu_custom_call.1} parent=0
    _
  %s10 = ssub.s32 1, %s8
  %s11 = scalar_select 0, %s10, %s8
  // Predicated region
  $region2: #{tpu_custom_call.1} parent=0 // pred_check
    _
  $region3: #{tpu_custom_call.1} parent=0 // pred_check_branch
    %13 = sbr.rel (0) target = $region5
  $region4: #{tpu_custom_call.1} parent=0 // pred_region
    _
  $region5: #{tpu_custom_call.1} parent=0 // pred_fallthru
    _
  // Predicated region
  $region6: #{tpu_custom_call.1} parent=0 // pred_check
    _
  $region7: #{tpu_custom_call.1} parent=0 // pred_check_branch
    %15 = sbr.rel (0) target = $region9
  $region8: #{tpu_custom_call.1} parent=0 // pred_region
    _
  $region9: #{tpu_custom_call.1} parent=0 // pred_fallthru
    _
  // Predicated region
  $region10: #{tpu_custom_call.1} parent=0 // pred_check
    _
  $region11: #{tpu_custom_call.1} parent=0 // pred_check_branch
    %17 = sbr.rel (0) target = $region13
  $region12: #{tpu_custom_call.1} parent=0 // pred_region
    _
  $region13: #{tpu_custom_call.1} parent=0 // pred_fallthru
    _
  // Predicated region
  $region14: #{tpu_custom_call.1} parent=0 // pred_check
    _
  $region15: #{tpu_custom_call.1} parent=0 // pred_check_branch
    %19 = sbr.rel (0) target = $region17
  $region16: #{tpu_custom_call.1} parent=0 // pred_region
    _
  $region17: #{tpu_custom_call.1} parent=0 // pred_fallthru
    _
  // Predicated region
  $region18: #{tpu_custom_call.1} parent=0 // pred_check
    _
  $region19: #{tpu_custom_call.1} parent=0 // pred_check_branch
    %21 = sbr.rel (0) target = $region21
  $region20: #{tpu_custom_call.1} parent=0 // pred_region
    _
  $region21: #{tpu_custom_call.1} parent=0 // pred_fallthru
    _
  // Predicated region
  $region22: #{tpu_custom_call.1} parent=0 // pred_check
    _
  $region23: #{tpu_custom_call.1} parent=0 // pred_check_branch
    %23 = sbr.rel (0) target = $region25
  $region24: #{tpu_custom_call.1} parent=0 // pred_region
    _
  $region25: #{tpu_custom_call.1} parent=0 // pred_fallthru
    _
  // Predicated region
  $region26: #{tpu_custom_call.1} parent=0 // pred_check
    _
  $region27: #{tpu_custom_call.1} parent=0 // pred_check_branch
    %25 = sbr.rel (0) target = $region29
  $region28: #{tpu_custom_call.1} parent=0 // pred_region
    _
  $region29: #{tpu_custom_call.1} parent=0 // pred_fallthru
    _
  %p27 = scmp.eq.s32.totalorder 0, 0
  // Predicated region
  $region30: #{tpu_custom_call.1} parent=0 // pred_check
    %p28 = pneg %p27
  $region31: #{tpu_custom_call.1} parent=0 // pred_check_branch
    %30 = sbr.rel (%p28) target = $region33
  $region32: #{tpu_custom_call.1} parent=0 // pred_region
    %v31 = vld [vmem:[%s1] sm:$0xf]
    %v32 = vld [vmem:[%s1 + $0x4] sm:$0xf]
    %v33 = vld [vmem:[%s1 + $0x8] sm:$0xf]
    %v34 = vld [vmem:[%s1 + $0xc] sm:$0xf]
    %v35 = vld [vmem:[%s1 + $0x10] sm:$0xf]
    %v36 = vld [vmem:[%s1 + $0x14] sm:$0xf]
    %v37 = vld [vmem:[%s1 + $0x18] sm:$0xf]
    %v38 = vld [vmem:[%s1 + $0x1c] sm:$0xf]
    %v39 = vld [vmem:[%s1 + $0x20] sm:$0xf]
    %v40 = vld [vmem:[%s1 + $0x24] sm:$0xf]
    %v41 = vld [vmem:[%s1 + $0x28] sm:$0xf]
    %v42 = vld [vmem:[%s1 + $0x2c] sm:$0xf]
    %v43 = vld [vmem:[%s1 + $0x30] sm:$0xf]
    %v44 = vld [vmem:[%s1 + $0x34] sm:$0xf]
    %v45 = vld [vmem:[%s1 + $0x38] sm:$0xf]
    %v46 = vld [vmem:[%s1 + $0x3c] sm:$0xf]
    %v47 = vld [vmem:[%s3] sm:$0x7]
    %v48 = vld [vmem:[%s4] sm:$0x1]
    %v50 = vperm.slane %v48, 0
    %v68 = vunpack.c.l.b16 %v31
    %v69 = vunpack.c.l.b16 %v32
    %v70 = vunpack.c.l.b16 %v33
    %v71 = vunpack.c.l.b16 %v34
    %v72 = vunpack.c.l.b16 %v35
    %v73 = vunpack.c.l.b16 %v36
    %v74 = vunpack.c.l.b16 %v37
    %v75 = vunpack.c.l.b16 %v38
    %v76 = vunpack.c.l.b16 %v39
    %v77 = vunpack.c.l.b16 %v40
    %v78 = vunpack.c.l.b16 %v41
    %v79 = vunpack.c.l.b16 %v42
    %v80 = vunpack.c.l.b16 %v43
    %v81 = vunpack.c.l.b16 %v44
    %v82 = vunpack.c.l.b16 %v45
    %v83 = vunpack.c.l.b16 %v46
    %v84 = vpack.c.b16 %v69, %v68
    %v85 = vpack.c.b16 %v71, %v70
    %v86 = vpack.c.b16 %v73, %v72
    %v87 = vpack.c.b16 %v75, %v74
    %v88 = vpack.c.b16 %v77, %v76
    %v89 = vpack.c.b16 %v79, %v78
    %v90 = vpack.c.b16 %v81, %v80
    %v91 = vpack.c.b16 %v83, %v82
    %vm92 = vcmask 39936
    %v94 = vsel %vm92, %v84, 0
    %v97 = vsel %vm92, %v85, 0
    %v100 = vsel %vm92, %v86, 0
    %v103 = vsel %vm92, %v87, 0
    %v106 = vsel %vm92, %v88, 0
    %v109 = vsel %vm92, %v89, 0
    %v112 = vsel %vm92, %v90, 0
    %v115 = vsel %vm92, %v91, 0
    %vm117 = vcmask 1041408
    %vm118 = vcmask 1042432
    %v119 = vsel %vm117, 4294967295, 65535
    %v120 = vsel %vm118, %v119, 0
    %v122 = vand.u32 %v47, %v120
    %124 = vmatpush.bf16.msra.mxu0 0
    %125 = vmatpush.bf16.msra.mxu0 0
    %126 = vmatpush.bf16.msra.mxu0 0
    %127 = vmatpush.bf16.msra.mxu0 0
    %128 = vmatpush.bf16.msra.mxu0 0
    %129 = vmatpush.bf16.msra.mxu0 0
    %130 = vmatpush.bf16.msra.mxu0 0
    %131 = vmatpush.bf16.msra.mxu0 %v122
    %132 = vmatmul.bf16.gmra.mxu0 %v94
    %v133 = vpop.f32.mrf.mxu0
    %v134 = vadd.f32 %v50, %v133
    %v135 = vpop.f32.mrf.mxu0
    %v136 = vadd.f32 %v50, %v135
    %137 = vmatmul.bf16.gmra.mxu0 %v97
    %v138 = vpop.f32.mrf.mxu0
    %v139 = vadd.f32 %v50, %v138
    %v140 = vpop.f32.mrf.mxu0
    %v141 = vadd.f32 %v50, %v140
    %142 = vmatmul.bf16.gmra.mxu0 %v100
    %v143 = vpop.f32.mrf.mxu0
    %v144 = vadd.f32 %v50, %v143
    %v145 = vpop.f32.mrf.mxu0
    %v146 = vadd.f32 %v50, %v145
    %147 = vmatmul.bf16.gmra.mxu0 %v103
    %v148 = vpop.f32.mrf.mxu0
    %v149 = vadd.f32 %v50, %v148
    %v150 = vpop.f32.mrf.mxu0
    %v151 = vadd.f32 %v50, %v150
    %152 = vmatmul.bf16.gmra.mxu0 %v106
    %v153 = vpop.f32.mrf.mxu0
    %v154 = vadd.f32 %v50, %v153
    %v155 = vpop.f32.mrf.mxu0
    %v156 = vadd.f32 %v50, %v155
    %157 = vmatmul.bf16.gmra.mxu0 %v109
    %v158 = vpop.f32.mrf.mxu0
    %v159 = vadd.f32 %v50, %v158
    %v160 = vpop.f32.mrf.mxu0
    %v161 = vadd.f32 %v50, %v160
    %162 = vmatmul.bf16.gmra.mxu0 %v112
    %v163 = vpop.f32.mrf.mxu0
    %v164 = vadd.f32 %v50, %v163
    %v165 = vpop.f32.mrf.mxu0
    %v166 = vadd.f32 %v50, %v165
    %167 = vmatmul.bf16.gmra.mxu0 %v115
    %v168 = vpop.f32.mrf.mxu0
    %v169 = vadd.f32 %v50, %v168
    %v170 = vpop.f32.mrf.mxu0
    %v171 = vadd.f32 %v50, %v170
    %172 = vdwg.mxu0
    %vm173 = vcmask 261120
    %174 = vst.msk [vmem:[#allocation2] sm:$0xff] %vm173, %v134
    %175 = vst.msk [vmem:[#allocation2 + $0x8] sm:$0xff] %vm173, %v136
    %176 = vst.msk [vmem:[#allocation2 + $0x10] sm:$0xff] %vm173, %v139
    %177 = vst.msk [vmem:[#allocation2 + $0x18] sm:$0xff] %vm173, %v141
    %178 = vst.msk [vmem:[#allocation2 + $0x20] sm:$0xff] %vm173, %v144
    %179 = vst.msk [vmem:[#allocation2 + $0x28] sm:$0xff] %vm173, %v146
    %180 = vst.msk [vmem:[#allocation2 + $0x30] sm:$0xff] %vm173, %v149
    %181 = vst.msk [vmem:[#allocation2 + $0x38] sm:$0xff] %vm173, %v151
    %182 = vst.msk [vmem:[#allocation2 + $0x40] sm:$0xff] %vm173, %v154
    %183 = vst.msk [vmem:[#allocation2 + $0x48] sm:$0xff] %vm173, %v156
    %184 = vst.msk [vmem:[#allocation2 + $0x50] sm:$0xff] %vm173, %v159
    %185 = vst.msk [vmem:[#allocation2 + $0x58] sm:$0xff] %vm173, %v161
    %186 = vst.msk [vmem:[#allocation2 + $0x60] sm:$0xff] %vm173, %v164
    %187 = vst.msk [vmem:[#allocation2 + $0x68] sm:$0xff] %vm173, %v166
    %188 = vst.msk [vmem:[#allocation2 + $0x70] sm:$0xff] %vm173, %v169
    %189 = vst.msk [vmem:[#allocation2 + $0x78] sm:$0xff] %vm173, %v171
  $region33: #{tpu_custom_call.1} parent=0 // pred_fallthru
    _
  %v190 = vld [vmem:[#allocation2] sm:$0xff]
  %v191 = vld [vmem:[#allocation2 + $0x8] sm:$0xff]
  %v192 = vld [vmem:[#allocation2 + $0x10] sm:$0xff]
  %v193 = vld [vmem:[#allocation2 + $0x18] sm:$0xff]
  %v194 = vld [vmem:[#allocation2 + $0x20] sm:$0xff]
  %v195 = vld [vmem:[#allocation2 + $0x28] sm:$0xff]
  %v196 = vld [vmem:[#allocation2 + $0x30] sm:$0xff]
  %v197 = vld [vmem:[#allocation2 + $0x38] sm:$0xff]
  %v198 = vld [vmem:[#allocation2 + $0x40] sm:$0xff]
  %v199 = vld [vmem:[#allocation2 + $0x48] sm:$0xff]
  %v200 = vld [vmem:[#allocation2 + $0x50] sm:$0xff]
  %v201 = vld [vmem:[#allocation2 + $0x58] sm:$0xff]
  %v202 = vld [vmem:[#allocation2 + $0x60] sm:$0xff]
  %v203 = vld [vmem:[#allocation2 + $0x68] sm:$0xff]
  %v204 = vld [vmem:[#allocation2 + $0x70] sm:$0xff]
  %v205 = vld [vmem:[#allocation2 + $0x78] sm:$0xff]
  %v206 = vld [vmem:[%s0] sm:$0xff]
  %v207 = vld [vmem:[%s0 + $0x8] sm:$0xff]
  %v208 = vld [vmem:[%s0 + $0x10] sm:$0xff]
  %v209 = vld [vmem:[%s0 + $0x18] sm:$0xff]
  %v210 = vld [vmem:[%s0 + $0x20] sm:$0xff]
  %v211 = vld [vmem:[%s0 + $0x28] sm:$0xff]
  %v212 = vld [vmem:[%s0 + $0x30] sm:$0xff]
  %v213 = vld [vmem:[%s0 + $0x38] sm:$0xff]
  %v214 = vld [vmem:[%s0 + $0x40] sm:$0xff]
  %v215 = vld [vmem:[%s0 + $0x48] sm:$0xff]
  %v216 = vld [vmem:[%s0 + $0x50] sm:$0xff]
  %v217 = vld [vmem:[%s0 + $0x58] sm:$0xff]
  %v218 = vld [vmem:[%s0 + $0x60] sm:$0xff]
  %v219 = vld [vmem:[%s0 + $0x68] sm:$0xff]
  %v220 = vld [vmem:[%s0 + $0x70] sm:$0xff]
  %v221 = vld [vmem:[%s0 + $0x78] sm:$0xff]
  %v222 = vld [vmem:[%s2] sm:$0xf]
  %v223 = vld [vmem:[%s2 + $0x4] sm:$0xf]
  %v224 = vld [vmem:[%s2 + $0x8] sm:$0xf]
  %v225 = vld [vmem:[%s2 + $0xc] sm:$0xf]
  %v226 = vld [vmem:[%s2 + $0x10] sm:$0xf]
  %v227 = vld [vmem:[%s2 + $0x14] sm:$0xf]
  %v228 = vld [vmem:[%s2 + $0x18] sm:$0xf]
  %v229 = vld [vmem:[%s2 + $0x1c] sm:$0xf]
  %v230 = vld [vmem:[%s2 + $0x20] sm:$0xf]
  %v231 = vld [vmem:[%s2 + $0x24] sm:$0xf]
  %v232 = vld [vmem:[%s2 + $0x28] sm:$0xf]
  %v233 = vld [vmem:[%s2 + $0x2c] sm:$0xf]
  %v234 = vld [vmem:[%s2 + $0x30] sm:$0xf]
  %v235 = vld [vmem:[%s2 + $0x34] sm:$0xf]
  %v236 = vld [vmem:[%s2 + $0x38] sm:$0xf]
  %v237 = vld [vmem:[%s2 + $0x3c] sm:$0xf]
  %v238 = vld [vmem:[%s2 + $0x40] sm:$0xf]
  %v239 = vld [vmem:[%s2 + $0x44] sm:$0xf]
  %v240 = vld [vmem:[%s2 + $0x48] sm:$0xf]
  %v241 = vld [vmem:[%s2 + $0x4c] sm:$0xf]
  %v242 = vld [vmem:[%s2 + $0x50] sm:$0xf]
  %v243 = vld [vmem:[%s2 + $0x54] sm:$0xf]
  %v244 = vld [vmem:[%s2 + $0x58] sm:$0xf]
  %v245 = vld [vmem:[%s2 + $0x5c] sm:$0xf]
  %v246 = vld [vmem:[%s2 + $0x60] sm:$0xf]
  %v247 = vld [vmem:[%s2 + $0x64] sm:$0xf]
  %v248 = vld [vmem:[%s2 + $0x68] sm:$0xf]
  %v249 = vld [vmem:[%s2 + $0x6c] sm:$0xf]
  %v250 = vld [vmem:[%s2 + $0x70] sm:$0xf]
  %v251 = vld [vmem:[%s2 + $0x74] sm:$0xf]
  %v252 = vld [vmem:[%s2 + $0x78] sm:$0xf]
  %v253 = vld [vmem:[%s2 + $0x7c] sm:$0xf]
  %v270 = vunpack.c.l.b16 %v206
  %v271 = vunpack.c.h.b16 %v206
  %v272 = vunpack.c.l.b16 %v207
  %v273 = vunpack.c.h.b16 %v207
  %v274 = vunpack.c.l.b16 %v208
  %v275 = vunpack.c.h.b16 %v208
  %v276 = vunpack.c.l.b16 %v209
  %v277 = vunpack.c.h.b16 %v209
  %v278 = vunpack.c.l.b16 %v210
  %v279 = vunpack.c.h.b16 %v210
  %v280 = vunpack.c.l.b16 %v211
  %v281 = vunpack.c.h.b16 %v211
  %v282 = vunpack.c.l.b16 %v212
  %v283 = vunpack.c.h.b16 %v212
  %v284 = vunpack.c.l.b16 %v213
  %v285 = vunpack.c.h.b16 %v213
  %v286 = vunpack.c.l.b16 %v214
  %v287 = vunpack.c.h.b16 %v214
  %v288 = vunpack.c.l.b16 %v215
  %v289 = vunpack.c.h.b16 %v215
  %v290 = vunpack.c.l.b16 %v216
  %v291 = vunpack.c.h.b16 %v216
  %v292 = vunpack.c.l.b16 %v217
  %v293 = vunpack.c.h.b16 %v217
  %v294 = vunpack.c.l.b16 %v218
  %v295 = vunpack.c.h.b16 %v218
  %v296 = vunpack.c.l.b16 %v219
  %v297 = vunpack.c.h.b16 %v219
  %v298 = vunpack.c.l.b16 %v220
  %v299 = vunpack.c.h.b16 %v220
  %v300 = vunpack.c.l.b16 %v221
  %v301 = vunpack.c.h.b16 %v221
  %v302 = vpack.c.b16 %v272, %v270
  %v303 = vpack.c.b16 %v273, %v271
  %v304 = vpack.c.b16 %v276, %v274
  %v305 = vpack.c.b16 %v277, %v275
  %v306 = vpack.c.b16 %v280, %v278
  %v307 = vpack.c.b16 %v281, %v279
  %v308 = vpack.c.b16 %v284, %v282
  %v309 = vpack.c.b16 %v285, %v283
  %v310 = vpack.c.b16 %v288, %v286
  %v311 = vpack.c.b16 %v289, %v287
  %v312 = vpack.c.b16 %v292, %v290
  %v313 = vpack.c.b16 %v293, %v291
  %v314 = vpack.c.b16 %v296, %v294
  %v315 = vpack.c.b16 %v297, %v295
  %v316 = vpack.c.b16 %v300, %v298
  %v317 = vpack.c.b16 %v301, %v299
  %v366 = vunpack.c.l.b16 %v222
  %v367 = vunpack.c.l.b16 %v223
  %v368 = vunpack.c.l.b16 %v224
  %v369 = vunpack.c.l.b16 %v225
  %v370 = vunpack.c.l.b16 %v226
  %v371 = vunpack.c.l.b16 %v227
  %v372 = vunpack.c.l.b16 %v228
  %v373 = vunpack.c.l.b16 %v229
  %v374 = vunpack.c.l.b16 %v230
  %v375 = vunpack.c.l.b16 %v231
  %v376 = vunpack.c.l.b16 %v232
  %v377 = vunpack.c.l.b16 %v233
  %v378 = vunpack.c.l.b16 %v234
  %v379 = vunpack.c.l.b16 %v235
  %v380 = vunpack.c.l.b16 %v236
  %v381 = vunpack.c.l.b16 %v237
  %v382 = vunpack.c.l.b16 %v238
  %v383 = vunpack.c.l.b16 %v239
  %v384 = vunpack.c.l.b16 %v240
  %v385 = vunpack.c.l.b16 %v241
  %v386 = vunpack.c.l.b16 %v242
  %v387 = vunpack.c.l.b16 %v243
  %v388 = vunpack.c.l.b16 %v244
  %v389 = vunpack.c.l.b16 %v245
  %v390 = vunpack.c.l.b16 %v246
  %v391 = vunpack.c.l.b16 %v247
  %v392 = vunpack.c.l.b16 %v248
  %v393 = vunpack.c.l.b16 %v249
  %v394 = vunpack.c.l.b16 %v250
  %v395 = vunpack.c.l.b16 %v251
  %v396 = vunpack.c.l.b16 %v252
  %v397 = vunpack.c.l.b16 %v253
  %v398 = vpack.c.b16 %v367, %v366
  %v399 = vpack.c.b16 %v369, %v368
  %v400 = vpack.c.b16 %v371, %v370
  %v401 = vpack.c.b16 %v373, %v372
  %v402 = vpack.c.b16 %v375, %v374
  %v403 = vpack.c.b16 %v377, %v376
  %v404 = vpack.c.b16 %v379, %v378
  %v405 = vpack.c.b16 %v381, %v380
  %v406 = vpack.c.b16 %v383, %v382
  %v407 = vpack.c.b16 %v385, %v384
  %v408 = vpack.c.b16 %v387, %v386
  %v409 = vpack.c.b16 %v389, %v388
  %v410 = vpack.c.b16 %v391, %v390
  %v411 = vpack.c.b16 %v393, %v392
  %v412 = vpack.c.b16 %v395, %v394
  %v413 = vpack.c.b16 %v397, %v396
  %430 = vmatpush.bf16.msra.mxu0 %v405
  %431 = vmatpush.bf16.msra.mxu0 %v404
  %432 = vmatpush.bf16.msra.mxu0 %v403
  %433 = vmatpush.bf16.msra.mxu0 %v402
  %434 = vmatpush.bf16.msra.mxu0 %v401
  %435 = vmatpush.bf16.msra.mxu0 %v400
  %436 = vmatpush.bf16.msra.mxu0 %v399
  %437 = vmatpush.bf16.msra.mxu0 %v398
  %438 = vmatmul.bf16.gmra.mxu0 %v302
  %v439 = vpop.f32.mrf.mxu0
  %v440 = vadd.f32 0.0, %v439
  %v441 = vpop.f32.mrf.mxu0
  %v442 = vadd.f32 0.0, %v441
  %443 = vmatmul.bf16.gmra.mxu0 %v304
  %v444 = vpop.f32.mrf.mxu0
  %v445 = vadd.f32 0.0, %v444
  %v446 = vpop.f32.mrf.mxu0
  %v447 = vadd.f32 0.0, %v446
  %448 = vmatmul.bf16.gmra.mxu0 %v306
  %v449 = vpop.f32.mrf.mxu0
  %v450 = vadd.f32 0.0, %v449
  %v451 = vpop.f32.mrf.mxu0
  %v452 = vadd.f32 0.0, %v451
  %453 = vmatmul.bf16.gmra.mxu0 %v308
  %v454 = vpop.f32.mrf.mxu0
  %v455 = vadd.f32 0.0, %v454
  %v456 = vpop.f32.mrf.mxu0
  %v457 = vadd.f32 0.0, %v456
  %458 = vmatmul.bf16.gmra.mxu0 %v310
  %v459 = vpop.f32.mrf.mxu0
  %v460 = vadd.f32 0.0, %v459
  %v461 = vpop.f32.mrf.mxu0
  %v462 = vadd.f32 0.0, %v461
  %463 = vmatmul.bf16.gmra.mxu0 %v312
  %v464 = vpop.f32.mrf.mxu0
  %v465 = vadd.f32 0.0, %v464
  %v466 = vpop.f32.mrf.mxu0
  %v467 = vadd.f32 0.0, %v466
  %468 = vmatmul.bf16.gmra.mxu0 %v314
  %v469 = vpop.f32.mrf.mxu0
  %v470 = vadd.f32 0.0, %v469
  %v471 = vpop.f32.mrf.mxu0
  %v472 = vadd.f32 0.0, %v471
  %473 = vmatmul.bf16.gmra.mxu0 %v316
  %v474 = vpop.f32.mrf.mxu0
  %v475 = vadd.f32 0.0, %v474
  %v476 = vpop.f32.mrf.mxu0
  %v477 = vadd.f32 0.0, %v476
  %478 = vdwg.mxu0
  %479 = vmatpush.bf16.msra.mxu0 %v413
  %480 = vmatpush.bf16.msra.mxu0 %v412
  %481 = vmatpush.bf16.msra.mxu0 %v411
  %482 = vmatpush.bf16.msra.mxu0 %v410
  %483 = vmatpush.bf16.msra.mxu0 %v409
  %484 = vmatpush.bf16.msra.mxu0 %v408
  %485 = vmatpush.bf16.msra.mxu0 %v407
  %486 = vmatpush.bf16.msra.mxu0 %v406
  %487 = vmatmul.bf16.gmra.mxu0 %v303
  %v488 = vpop.f32.mrf.mxu0
  %v489 = vadd.f32 %v440, %v488
  %v490 = vpop.f32.mrf.mxu0
  %v491 = vadd.f32 %v442, %v490
  %492 = vmatmul.bf16.gmra.mxu0 %v305
  %v493 = vpop.f32.mrf.mxu0
  %v494 = vadd.f32 %v445, %v493
  %v495 = vpop.f32.mrf.mxu0
  %v496 = vadd.f32 %v447, %v495
  %497 = vmatmul.bf16.gmra.mxu0 %v307
  %v498 = vpop.f32.mrf.mxu0
  %v499 = vadd.f32 %v450, %v498
  %v500 = vpop.f32.mrf.mxu0
  %v501 = vadd.f32 %v452, %v500
  %502 = vmatmul.bf16.gmra.mxu0 %v309
  %v503 = vpop.f32.mrf.mxu0
  %v504 = vadd.f32 %v455, %v503
  %v505 = vpop.f32.mrf.mxu0
  %v506 = vadd.f32 %v457, %v505
  %507 = vmatmul.bf16.gmra.mxu0 %v311
  %v508 = vpop.f32.mrf.mxu0
  %v509 = vadd.f32 %v460, %v508
  %v510 = vpop.f32.mrf.mxu0
  %v511 = vadd.f32 %v462, %v510
  %512 = vmatmul.bf16.gmra.mxu0 %v313
  %v513 = vpop.f32.mrf.mxu0
  %v514 = vadd.f32 %v465, %v513
  %v515 = vpop.f32.mrf.mxu0
  %v516 = vadd.f32 %v467, %v515
  %517 = vmatmul.bf16.gmra.mxu0 %v315
  %v518 = vpop.f32.mrf.mxu0
  %v519 = vadd.f32 %v470, %v518
  %v520 = vpop.f32.mrf.mxu0
  %v521 = vadd.f32 %v472, %v520
  %522 = vmatmul.bf16.gmra.mxu0 %v317
  %v523 = vpop.f32.mrf.mxu0
  %v524 = vadd.f32 %v475, %v523
  %v525 = vpop.f32.mrf.mxu0
  %v526 = vadd.f32 %v477, %v525
  %527 = vdwg.mxu0
  %v528 = vadd.f32 %v190, %v489
  %v529 = vadd.f32 %v191, %v491
  %v530 = vadd.f32 %v192, %v494
  %v531 = vadd.f32 %v193, %v496
  %v532 = vadd.f32 %v194, %v499
  %v533 = vadd.f32 %v195, %v501
  %v534 = vadd.f32 %v196, %v504
  %v535 = vadd.f32 %v197, %v506
  %v536 = vadd.f32 %v198, %v509
  %v537 = vadd.f32 %v199, %v511
  %v538 = vadd.f32 %v200, %v514
  %v539 = vadd.f32 %v201, %v516
  %v540 = vadd.f32 %v202, %v519
  %v541 = vadd.f32 %v203, %v521
  %v542 = vadd.f32 %v204, %v524
  %v543 = vadd.f32 %v205, %v526
  %vm544 = vcmask 261120
  %545 = vst.msk [vmem:[#allocation2] sm:$0xff] %vm544, %v528
  %546 = vst.msk [vmem:[#allocation2 + $0x8] sm:$0xff] %vm544, %v529
  %547 = vst.msk [vmem:[#allocation2 + $0x10] sm:$0xff] %vm544, %v530
  %548 = vst.msk [vmem:[#allocation2 + $0x18] sm:$0xff] %vm544, %v531
  %549 = vst.msk [vmem:[#allocation2 + $0x20] sm:$0xff] %vm544, %v532
  %550 = vst.msk [vmem:[#allocation2 + $0x28] sm:$0xff] %vm544, %v533
  %551 = vst.msk [vmem:[#allocation2 + $0x30] sm:$0xff] %vm544, %v534
  %552 = vst.msk [vmem:[#allocation2 + $0x38] sm:$0xff] %vm544, %v535
  %553 = vst.msk [vmem:[#allocation2 + $0x40] sm:$0xff] %vm544, %v536
  %554 = vst.msk [vmem:[#allocation2 + $0x48] sm:$0xff] %vm544, %v537
  %555 = vst.msk [vmem:[#allocation2 + $0x50] sm:$0xff] %vm544, %v538
  %556 = vst.msk [vmem:[#allocation2 + $0x58] sm:$0xff] %vm544, %v539
  %557 = vst.msk [vmem:[#allocation2 + $0x60] sm:$0xff] %vm544, %v540
  %558 = vst.msk [vmem:[#allocation2 + $0x68] sm:$0xff] %vm544, %v541
  %559 = vst.msk [vmem:[#allocation2 + $0x70] sm:$0xff] %vm544, %v542
  %560 = vst.msk [vmem:[#allocation2 + $0x78] sm:$0xff] %vm544, %v543
  // Predicated region
  $region34: #{tpu_custom_call.1} parent=0 // pred_check
    %p561 = pneg %p27
  $region35: #{tpu_custom_call.1} parent=0 // pred_check_branch
    %563 = sbr.rel (%p561) target = $region37
  $region36: #{tpu_custom_call.1} parent=0 // pred_region
    %v564 = vld [vmem:[#allocation2] sm:$0xff]
    %v565 = vld [vmem:[#allocation2 + $0x8] sm:$0xff]
    %v566 = vld [vmem:[#allocation2 + $0x10] sm:$0xff]
    %v567 = vld [vmem:[#allocation2 + $0x18] sm:$0xff]
    %v568 = vld [vmem:[#allocation2 + $0x20] sm:$0xff]
    %v569 = vld [vmem:[#allocation2 + $0x28] sm:$0xff]
    %v570 = vld [vmem:[#allocation2 + $0x30] sm:$0xff]
    %v571 = vld [vmem:[#allocation2 + $0x38] sm:$0xff]
    %v572 = vld [vmem:[#allocation2 + $0x40] sm:$0xff]
    %v573 = vld [vmem:[#allocation2 + $0x48] sm:$0xff]
    %v574 = vld [vmem:[#allocation2 + $0x50] sm:$0xff]
    %v575 = vld [vmem:[#allocation2 + $0x58] sm:$0xff]
    %v576 = vld [vmem:[#allocation2 + $0x60] sm:$0xff]
    %v577 = vld [vmem:[#allocation2 + $0x68] sm:$0xff]
    %v578 = vld [vmem:[#allocation2 + $0x70] sm:$0xff]
    %v579 = vld [vmem:[#allocation2 + $0x78] sm:$0xff]
    %v580 = vmax.f32 %v564, 0.0
    %v581 = vmax.f32 %v565, 0.0
    %v582 = vmax.f32 %v566, 0.0
    %v583 = vmax.f32 %v567, 0.0
    %v584 = vmax.f32 %v568, 0.0
    %v585 = vmax.f32 %v569, 0.0
    %v586 = vmax.f32 %v570, 0.0
    %v587 = vmax.f32 %v571, 0.0
    %v588 = vmax.f32 %v572, 0.0
    %v589 = vmax.f32 %v573, 0.0
    %v590 = vmax.f32 %v574, 0.0
    %v591 = vmax.f32 %v575, 0.0
    %v592 = vmax.f32 %v576, 0.0
    %v593 = vmax.f32 %v577, 0.0
    %v594 = vmax.f32 %v578, 0.0
    %v595 = vmax.f32 %v579, 0.0
    %v596 = vpack.c.bf16 %v581, %v580
    %v597 = vpack.c.bf16 %v583, %v582
    %v598 = vpack.c.bf16 %v585, %v584
    %v599 = vpack.c.bf16 %v587, %v586
    %v600 = vpack.c.bf16 %v589, %v588
    %v601 = vpack.c.bf16 %v591, %v590
    %v602 = vpack.c.bf16 %v593, %v592
    %v603 = vpack.c.bf16 %v595, %v594
    %v604 = vld [vmem:[%s5] sm:$0xf]
    %v605 = vld [vmem:[%s5 + $0x4] sm:$0xf]
    %v606 = vld [vmem:[%s5 + $0x8] sm:$0xf]
    %v607 = vld [vmem:[%s5 + $0xc] sm:$0xf]
    %v608 = vld [vmem:[%s6] sm:$0x1]
    %v610 = vperm.slane %v608, 0
    %v616 = vunpack.c.l.b16 %v604
    %v617 = vunpack.c.l.b16 %v605
    %v618 = vunpack.c.l.b16 %v606
    %v619 = vunpack.c.l.b16 %v607
    %v620 = vpack.c.b16 %v617, %v616
    %v621 = vpack.c.b16 %v619, %v618
    %v625 = vsel %vm544, %v596, 0
    %v628 = vsel %vm544, %v597, 0
    %v631 = vsel %vm544, %v598, 0
    %v634 = vsel %vm544, %v599, 0
    %v637 = vsel %vm544, %v600, 0
    %v640 = vsel %vm544, %v601, 0
    %v643 = vsel %vm544, %v602, 0
    %v646 = vsel %vm544, %v603, 0
    %648 = vmatpush.bf16.msra.mxu0 0
    %649 = vmatpush.bf16.msra.mxu0 0
    %650 = vmatpush.bf16.msra.mxu0 0
    %651 = vmatpush.bf16.msra.mxu0 0
    %652 = vmatpush.bf16.msra.mxu0 0
    %653 = vmatpush.bf16.msra.mxu0 0
    %654 = vmatpush.bf16.msra.mxu0 %v621
    %655 = vmatpush.bf16.msra.mxu0 %v620
    %656 = vmatmul.bf16.gmra.mxu0 %v625
    %v657 = vpop.f32.mrf.mxu0
    %v658 = vadd.f32 %v610, %v657
    %v659 = vpop.f32.mrf.mxu0
    %v660 = vadd.f32 %v610, %v659
    %661 = vmatmul.bf16.gmra.mxu0 %v628
    %v662 = vpop.f32.mrf.mxu0
    %v663 = vadd.f32 %v610, %v662
    %v664 = vpop.f32.mrf.mxu0
    %v665 = vadd.f32 %v610, %v664
    %666 = vmatmul.bf16.gmra.mxu0 %v631
    %v667 = vpop.f32.mrf.mxu0
    %v668 = vadd.f32 %v610, %v667
    %v669 = vpop.f32.mrf.mxu0
    %v670 = vadd.f32 %v610, %v669
    %671 = vmatmul.bf16.gmra.mxu0 %v634
    %v672 = vpop.f32.mrf.mxu0
    %v673 = vadd.f32 %v610, %v672
    %v674 = vpop.f32.mrf.mxu0
    %v675 = vadd.f32 %v610, %v674
    %676 = vmatmul.bf16.gmra.mxu0 %v637
    %v677 = vpop.f32.mrf.mxu0
    %v678 = vadd.f32 %v610, %v677
    %v679 = vpop.f32.mrf.mxu0
    %v680 = vadd.f32 %v610, %v679
    %681 = vmatmul.bf16.gmra.mxu0 %v640
    %v682 = vpop.f32.mrf.mxu0
    %v683 = vadd.f32 %v610, %v682
    %v684 = vpop.f32.mrf.mxu0
    %v685 = vadd.f32 %v610, %v684
    %686 = vmatmul.bf16.gmra.mxu0 %v643
    %v687 = vpop.f32.mrf.mxu0
    %v688 = vadd.f32 %v610, %v687
    %v689 = vpop.f32.mrf.mxu0
    %v690 = vadd.f32 %v610, %v689
    %691 = vmatmul.bf16.gmra.mxu0 %v646
    %v692 = vpop.f32.mrf.mxu0
    %v693 = vadd.f32 %v610, %v692
    %v694 = vpop.f32.mrf.mxu0
    %v695 = vadd.f32 %v610, %v694
    %696 = vdwg.mxu0
    %vm697 = vcmask 121856
    %698 = vst.msk [vmem:[%s7] sm:$0xff] %vm697, %v658
    %699 = vst.msk [vmem:[%s7 + $0x8] sm:$0xff] %vm697, %v660
    %700 = vst.msk [vmem:[%s7 + $0x10] sm:$0xff] %vm697, %v663
    %701 = vst.msk [vmem:[%s7 + $0x18] sm:$0xff] %vm697, %v665
    %702 = vst.msk [vmem:[%s7 + $0x20] sm:$0xff] %vm697, %v668
    %703 = vst.msk [vmem:[%s7 + $0x28] sm:$0xff] %vm697, %v670
    %704 = vst.msk [vmem:[%s7 + $0x30] sm:$0xff] %vm697, %v673
    %705 = vst.msk [vmem:[%s7 + $0x38] sm:$0xff] %vm697, %v675
    %706 = vst.msk [vmem:[%s7 + $0x40] sm:$0xff] %vm697, %v678
    %707 = vst.msk [vmem:[%s7 + $0x48] sm:$0xff] %vm697, %v680
    %708 = vst.msk [vmem:[%s7 + $0x50] sm:$0xff] %vm697, %v683
    %709 = vst.msk [vmem:[%s7 + $0x58] sm:$0xff] %vm697, %v685
    %710 = vst.msk [vmem:[%s7 + $0x60] sm:$0xff] %vm697, %v688
    %711 = vst.msk [vmem:[%s7 + $0x68] sm:$0xff] %vm697, %v690
    %712 = vst.msk [vmem:[%s7 + $0x70] sm:$0xff] %vm697, %v693
    %713 = vst.msk [vmem:[%s7 + $0x78] sm:$0xff] %vm697, %v695
  $region37: #{tpu_custom_call.1} parent=0 // pred_fallthru
    _
  // Predicated region
  $region38: #{tpu_custom_call.1} parent=0 // pred_check
    _
  $region39: #{tpu_custom_call.1} parent=0 // pred_check_branch
    %715 = sbr.rel (0) target = $region41
  $region40: #{tpu_custom_call.1} parent=0 // pred_region
    _
  $region41: #{tpu_custom_call.1} parent=0 // pred_fallthru
    _
  // Predicated region
  $region42: #{tpu_custom_call.1} parent=0 // pred_check
    _
  $region43: #{tpu_custom_call.1} parent=0 // pred_check_branch
    %717 = sbr.rel (0) target = $region45
  $region44: #{tpu_custom_call.1} parent=0 // pred_region
    _
  $region45: #{tpu_custom_call.1} parent=0 // pred_fallthru
    _

</llo_original>
